<compile_context>
chip_gen: v5e
topology: v5e:2x2
jax: 0.10.0
libtpu: 0.0.40
codegen_flags: <defaults>
</compile_context>

<pallas_src>
import jax
import jax.numpy as jnp
import numpy as np
from jax.experimental import pallas as pl
from jax.experimental.pallas import tpu as pltpu


NEG_SLOPE = 0.1


def _leaky_relu(x, slope=NEG_SLOPE):
    return jnp.where(x >= 0, x, slope * x)


def _round_up(x, m):
    return ((x + m - 1) // m) * m


def phi_kernel(x_ref, w1_ref, w2_ref, o_ref):
    # x_ref:  [tile_rows, G*in_dim]   VMEM (G consecutive rows packed on lanes)
    # w1_ref: [G*in_dim, G*hidden]    VMEM (block-diagonal W1^T, resident)
    # w2_ref: [G*hidden, G*hidden]    VMEM (block-diagonal W2^T, resident)
    # o_ref:  [tile_rows, G*hidden]   VMEM (lane-dense output view)
    x = x_ref[...].astype(w1_ref.dtype)          # in-kernel cast: no extra HBM pass
    h = jnp.dot(x, w1_ref[...], preferred_element_type=jnp.float32)
    h = _leaky_relu(h)                           # f32 elementwise (safe on v5e VPU)
    # TODO(synk): nn.Dropout is identity in eval/inference; training-mode dropout
    # would need pltpu.prng_seed + pltpu.prng_random_bits masking here.
    # Keep h in f32 for the second matmul (better numerics; plenty of MXU slack).
    y = jnp.dot(h, w2_ref[...].astype(jnp.float32),
                preferred_element_type=jnp.float32)
    y = _leaky_relu(y)
    o_ref[...] = y.astype(o_ref.dtype)


def phi_pack_weights(w1, w2, *, compute_dtype=jnp.bfloat16):
    """Build the (tiny) packed weight set once, outside the per-call path.

    w1: [hidden, in_dim]  (torch linear1.weight), w2: [hidden, hidden].
    compute_dtype: dtype fed to the MXU (accumulation is always f32).
    """
    hidden, in_dim = w1.shape
    assert w2.shape == (hidden, hidden)
    cdt = jnp.dtype(compute_dtype)
    # Lane packing factor: fold G consecutive rows into the lane axis so the
    # kernel's loads / MXU results / stores are 128-lane dense.
    G = 128 // hidden if (hidden < 128 and 128 % hidden == 0) else 1
    eye = jnp.eye(G, dtype=cdt)
    w1t = w1.T.astype(cdt)
    w2t = w2.T.astype(cdt)
    return {
        "w1T": w1t,                      # [in_dim, hidden]      (G = 1 fallback)
        "w2T": w2t,                      # [hidden, hidden]
        "w1p": jnp.kron(eye, w1t),       # [G*in_dim, G*hidden]  (packed path)
        "w2p": jnp.kron(eye, w2t),       # [G*hidden, G*hidden]
    }


def phi_forward(features, packed, *, tile_rows=None, out_dtype=None):
    """Phi forward pass.  features: [N, in_dim] -> [N, in_dim // 2]."""
    N, in_dim = features.shape
    in_dim_w, hidden = packed["w1T"].shape
    assert in_dim_w == in_dim
    out_dtype = jnp.dtype(out_dtype if out_dtype is not None else features.dtype)
    x_dtype = jnp.dtype(features.dtype)

    G = packed["w1p"].shape[1] // hidden
    if N % G != 0:
        # Ragged N: lane-packing would force a padded copy of the whole
        # activation tensor (an extra HBM pass on the dominant operand).  Run
        # the copy-free unpacked path instead; only the output stores lose
        # lane density.
        G = 1
    if G == 1:
        w1p, w2p = packed["w1T"], packed["w2T"]
    else:
        w1p, w2p = packed["w1p"], packed["w2p"]

    view_rows = N // G
    # Row-major merge of G consecutive rows into lanes: a pure view, no padding.
    x_view = features.reshape(view_rows, G * in_dim)

    sub = max(8, 32 // x_dtype.itemsize)       # sublane multiple (8 f32 / 16 bf16)
    if tile_rows is None:
        tile_rows = 1024                       # sweep: 512-2048 (v5e/v6e), 2048-4096 (v7x)
        if view_rows > 2 * sub:
            # Keep >= 2 grid steps so the "parallel" axis can use both v7x TCs.
            tile_rows = min(tile_rows, _round_up(pl.cdiv(view_rows, 2), sub))
    tile_rows = _round_up(tile_rows, sub)
    if view_rows <= tile_rows:
        tile_rows = view_rows                  # single full-extent block
    grid = (pl.cdiv(view_rows, tile_rows),)

    flops = (2 * view_rows * (G * in_dim) * (G * hidden)
             + 2 * view_rows * (G * hidden) * (G * hidden))
    bytes_accessed = (features.size * x_dtype.itemsize
                      + w1p.size * w1p.dtype.itemsize
                      + w2p.size * w2p.dtype.itemsize
                      + N * hidden * out_dtype.itemsize)

    out_view = pl.pallas_call(
        phi_kernel,
        out_shape=jax.ShapeDtypeStruct((view_rows, G * hidden), out_dtype),
        grid_spec=pltpu.PrefetchScalarGridSpec(
            num_scalar_prefetch=0,
            grid=grid,
            in_specs=[
                pl.BlockSpec((tile_rows, G * in_dim), lambda i: (i, 0)),
                # Constant index maps -> weight blocks stay resident in VMEM.
                # (pipeline_mode=pl.Buffered(1) would drop their second buffer,
                #  but they are <100 KiB here so it is not worth compile risk.)
                pl.BlockSpec((G * in_dim, G * hidden), lambda i: (0, 0)),
                pl.BlockSpec((G * hidden, G * hidden), lambda i: (0, 0)),
            ],
            out_specs=pl.BlockSpec((tile_rows, G * hidden), lambda i: (i, 0)),
        ),
        compiler_params=pltpu.CompilerParams(
            dimension_semantics=("parallel",),     # megacore sharding on v7x
            vmem_limit_bytes=32 * 1024 * 1024,     # headroom for large tile sweeps
        ),
        cost_estimate=pl.CostEstimate(
            flops=flops, transcendentals=0, bytes_accessed=bytes_accessed),
    )(x_view, w1p, w2p)

    # Undo the lane packing (pure view).  No row padding was added, no slicing.
    return out_view.reshape(N, hidden)


def xavier_uniform(key, fan_out, fan_in, gain=1.0, dtype=jnp.float32):
    # matches torch.nn.init.xavier_uniform_ for a [fan_out, fan_in] Linear weight
    limit = gain * np.sqrt(6.0 / (fan_in + fan_out))
    return jax.random.uniform(key, (fan_out, fan_in), dtype=dtype,
                              minval=-limit, maxval=limit)


def phi_reference(features, w1, w2):
    h = _leaky_relu(jnp.dot(features, w1.T, precision=jax.lax.Precision.HIGHEST))
    y = _leaky_relu(jnp.dot(h, w2.T, precision=jax.lax.Precision.HIGHEST))
    return y


if __name__ == "__main__":
    key = jax.random.PRNGKey(0)
    k_x1, k_x2, k_x3, k_w1, k_w2 = jax.random.split(key, 5)

    in_dim = 64
    hidden = in_dim // 2
    # PyTorch Linear weights: [out_features, in_features]
    w1 = xavier_uniform(k_w1, hidden, in_dim)     # linear1.weight
    w2 = xavier_uniform(k_w2, hidden, hidden)     # linear2.weight

    phi_fwd = jax.jit(phi_forward, static_argnames=("tile_rows", "out_dtype"))

    # 1) exact f32 compute path, small batch, single grid step, packed lanes.
    packed_f32 = phi_pack_weights(w1, w2, compute_dtype=jnp.float32)
    x1 = jax.random.normal(k_x1, (16, in_dim), dtype=jnp.float32)
    out1 = jax.block_until_ready(phi_fwd(x1, packed_f32))
    np.testing.assert_allclose(np.asarray(out1),
                               np.asarray(phi_reference(x1, w1, w2)),
                               rtol=1e-5, atol=1e-5)

    # Default packing: bf16 MXU dtype (f32 accumulation inside the kernel).
    packed = phi_pack_weights(w1, w2)

    def ref_bf16(x):
        return phi_reference(x.astype(jnp.bfloat16).astype(jnp.float32),
                             w1.astype(jnp.bfloat16).astype(jnp.float32),
                             w2.astype(jnp.bfloat16).astype(jnp.float32))

    # 2) ragged batch (N % 4 != 0 -> copy-free unpacked fallback), multi-step
    #    grid with a partial last tile (no jnp.pad anywhere).
    x2 = jax.random.normal(k_x2, (50, in_dim), dtype=jnp.float32)
    out2 = jax.block_until_ready(phi_fwd(x2, packed, tile_rows=16))
    np.testing.assert_allclose(np.asarray(out2), np.asarray(ref_bf16(x2)),
                               rtol=5e-2, atol=5e-2)

    # 3) packed path, default tiling (multi-step grid with a partial last tile),
    #    bf16 output store (halves output HBM traffic), f32 input streamed
    #    natively and cast to bf16 inside the kernel.
    x3 = jax.random.normal(k_x3, (200, in_dim), dtype=jnp.float32)
    out3 = jax.block_until_ready(phi_fwd(x3, packed, out_dtype=jnp.bfloat16))
    np.testing.assert_allclose(np.asarray(out3.astype(jnp.float32)),
                               np.asarray(ref_bf16(x3)),
                               rtol=5e-2, atol=5e-2)

    print("KERNEL_OK")
</pallas_src>

<mosaic_0001>
module attributes {stable_mosaic.version = 11 : i64} {
  func.func @phi_kernel(%arg0: i32, %arg1: memref<4x256xf32, #tpu.memory_space<vmem>>, %arg2: memref<256x128xf32, #tpu.memory_space<vmem>>, %arg3: memref<128x128xf32, #tpu.memory_space<vmem>>, %arg4: memref<4x128xf32, #tpu.memory_space<vmem>>) attributes {dimension_semantics = [#tpu.dimension_semantics<parallel>], iteration_bounds = array<i64: 1>, scalar_prefetch = 0 : i64, scratch_operands = 0 : i64, tpu.core_type = #tpu.core_type<tc>, window_params = [{transform_indices = @transform_0, window_bounds = array<i64: 4, 256>}, {pipeline_mode = #tpu.pipeline_mode<synchronous>, transform_indices = @transform_1, window_bounds = array<i64: 256, 128>}, {pipeline_mode = #tpu.pipeline_mode<synchronous>, transform_indices = @transform_2, window_bounds = array<i64: 128, 128>}, {transform_indices = @transform_3, window_bounds = array<i64: 4, 128>}]} {
    %c0 = arith.constant 0 : index
    %c0_0 = arith.constant 0 : index
    %0 = vector.load %arg1[%c0, %c0_0] : memref<4x256xf32, #tpu.memory_space<vmem>>, vector<4x256xf32>
    %c0_1 = arith.constant 0 : index
    %c0_2 = arith.constant 0 : index
    %1 = vector.load %arg2[%c0_1, %c0_2] : memref<256x128xf32, #tpu.memory_space<vmem>>, vector<256x128xf32>
    %cst = arith.constant dense<0.000000e+00> : vector<4x128xf32>
    %2 = tpu.matmul %0, %1, %cst {dimension_numbers = #tpu.dot_dimension_numbers<[1], [0], [0], [1], [0, 0, 1, 1], [], []>} : vector<4x256xf32>, vector<256x128xf32>, vector<4x128xf32> -> vector<4x128xf32>
    %cst_3 = arith.constant 0.000000e+00 : f32
    %3 = vector.broadcast %cst_3 : f32 to vector<4x128xf32>
    %4 = arith.cmpf oge, %2, %3 : vector<4x128xf32>
    %cst_4 = arith.constant 1.000000e-01 : f32
    %5 = vector.broadcast %cst_4 : f32 to vector<4x128xf32>
    %6 = arith.mulf %5, %2 : vector<4x128xf32>
    %7 = arith.select %4, %2, %6 : vector<4x128xi1>, vector<4x128xf32>
    %c0_5 = arith.constant 0 : index
    %c0_6 = arith.constant 0 : index
    %8 = vector.load %arg3[%c0_5, %c0_6] : memref<128x128xf32, #tpu.memory_space<vmem>>, vector<128x128xf32>
    %cst_7 = arith.constant dense<0.000000e+00> : vector<4x128xf32>
    %9 = tpu.matmul %7, %8, %cst_7 {dimension_numbers = #tpu.dot_dimension_numbers<[1], [0], [0], [1], [0, 0, 1, 1], [], []>} : vector<4x128xf32>, vector<128x128xf32>, vector<4x128xf32> -> vector<4x128xf32>
    %cst_8 = arith.constant 0.000000e+00 : f32
    %10 = vector.broadcast %cst_8 : f32 to vector<4x128xf32>
    %11 = arith.cmpf oge, %9, %10 : vector<4x128xf32>
    %cst_9 = arith.constant 1.000000e-01 : f32
    %12 = vector.broadcast %cst_9 : f32 to vector<4x128xf32>
    %13 = arith.mulf %12, %9 : vector<4x128xf32>
    %14 = arith.select %11, %9, %13 : vector<4x128xi1>, vector<4x128xf32>
    %c0_10 = arith.constant 0 : index
    %c0_11 = arith.constant 0 : index
    %15 = vector.load %arg4[%c0_10, %c0_11] : memref<4x128xf32, #tpu.memory_space<vmem>>, vector<4x128xf32>
    tpu.vector_store %arg4[%c0_10, %c0_11], %14 {strides = array<i32>} : memref<4x128xf32, #tpu.memory_space<vmem>>, vector<4x128xf32>,
    return
  }
  func.func @transform_0(%arg0: i32) -> (i32, i32) {
    %c0_i32 = arith.constant 0 : i32
    %c0_i32_0 = arith.constant 0 : i32
    return %arg0, %c0_i32 : i32, i32
  }
  func.func @transform_1(%arg0: i32) -> (i32, i32) {
    %c0_i32 = arith.constant 0 : i32
    %c0_i32_0 = arith.constant 0 : i32
    %c0_i32_1 = arith.constant 0 : i32
    return %c0_i32, %c0_i32_0 : i32, i32
  }
  func.func @transform_2(%arg0: i32) -> (i32, i32) {
    %c0_i32 = arith.constant 0 : i32
    %c0_i32_0 = arith.constant 0 : i32
    %c0_i32_1 = arith.constant 0 : i32
    return %c0_i32, %c0_i32_0 : i32, i32
  }
  func.func @transform_3(%arg0: i32) -> (i32, i32) {
    %c0_i32 = arith.constant 0 : i32
    %c0_i32_0 = arith.constant 0 : i32
    return %arg0, %c0_i32 : i32, i32
  }
}

</mosaic_0001>

<llo_original>
// kernel: phi_forward.1
$region0: #{phi_forward.1}
  #allocation0 [shape = 'u32[]', space=smem, size = 0x4, offset = 0x4, fixed_abs, tag = 'smem constant byte address 0x4 - core index']
  #allocation1 [shape = 'u32[72,128]{1,0:T(1,128)}', space=vmem, size = 0x9000, scoped, tag = 'internal scratch']
  %s0 = inlined_call_operand.vmem [shape: f32[4,256], index: 0, kind: input, shape index: {}]
  %s1 = inlined_call_operand.hbm [shape: f32[256,128], index: 1, kind: input, shape index: {}]
  %s2 = inlined_call_operand.hbm [shape: f32[128,128], index: 2, kind: input, shape index: {}]
  %s3 = inlined_call_operand.vmem [shape: f32[4,128], index: 3, kind: output, shape index: {}]
  %s4 = sld [smem:[#allocation0]]
  $region30: #{phi_forward.1} parent=0
    _
  %s6 = ssub.s32 1, %s4
  %s7 = scalar_select 0, %s6, %s4
  $region1: #{phi_forward.1} parent=0
    #allocation2 [shape = 'u8[131072]{0}', space=vmem, size = 0x20000, scoped, tag = 'input window, operand 1, single buffered']
    #allocation3 [shape = 's32[1]{0}', space=sflag, size = 0x4, scoped, tag = 'scoped memory for phi_forward.1']
    #allocation4 [shape = 'u8[65536]{0}', space=vmem, size = 0x10000, scoped, tag = 'input window, operand 2, single buffered']
    #allocation5 [shape = 's32[1]{0}', space=sflag, size = 0x4, scoped, tag = 'scoped memory for phi_forward.1']
    %8 = vsyncpa [#allocation3], 0
    %9 = vsyncpa [#allocation5], 0
    // Predicated region
    $region2: #{phi_forward.1} parent=1 // pred_check
      _
    $region3: #{phi_forward.1} parent=1 // pred_check_branch
      %11 = sbr.rel (0) target = $region5
    $region4: #{phi_forward.1} parent=1 // pred_region
      _
    $region5: #{phi_forward.1} parent=1 // pred_fallthru
      _
    // Predicated region
    $region6: #{phi_forward.1} parent=1 // pred_check
      _
    $region7: #{phi_forward.1} parent=1 // pred_check_branch
      %13 = sbr.rel (0) target = $region9
    $region8: #{phi_forward.1} parent=1 // pred_region
      %15 = vsyncadd [#allocation3], 0
      %s16 = sshll.u32 %s1, 4
      %s17 = int_to_ptr.hbm [resolvable:$true] %s16
      %s18 = sshll.u32 [#allocation2], 4
      %s19 = int_to_ptr.vmem [resolvable:$true] %s18
      %24 = dma.hbm_to_vmem [thread:$0]  %s17, 4096, %s19, [#allocation3], 128, 128, 8
    $region9: #{phi_forward.1} parent=1 // pred_fallthru
      _
    // Predicated region
    $region10: #{phi_forward.1} parent=1 // pred_check
      _
    $region11: #{phi_forward.1} parent=1 // pred_check_branch
      %26 = sbr.rel (0) target = $region13
    $region12: #{phi_forward.1} parent=1 // pred_region
      %28 = vsyncadd [#allocation5], 0
      %s29 = sshll.u32 %s2, 4
      %s30 = int_to_ptr.hbm [resolvable:$true] %s29
      %s31 = sshll.u32 [#allocation4], 4
      %s32 = int_to_ptr.vmem [resolvable:$true] %s31
      %37 = dma.hbm_to_vmem [thread:$0]  %s30, 2048, %s32, [#allocation5], 128, 128, 8
    $region13: #{phi_forward.1} parent=1 // pred_fallthru
      _
    // Predicated region
    $region14: #{phi_forward.1} parent=1 // pred_check
      _
    $region15: #{phi_forward.1} parent=1 // pred_check_branch
      %39 = sbr.rel (0) target = $region17
    $region16: #{phi_forward.1} parent=1 // pred_region
      %41 = dma.done [#allocation3], 4096
    $region17: #{phi_forward.1} parent=1 // pred_fallthru
      _
    // Predicated region
    $region18: #{phi_forward.1} parent=1 // pred_check
      _
    $region19: #{phi_forward.1} parent=1 // pred_check_branch
      %43 = sbr.rel (0) target = $region21
    $region20: #{phi_forward.1} parent=1 // pred_region
      %45 = dma.done [#allocation5], 2048
    $region21: #{phi_forward.1} parent=1 // pred_fallthru
      _
    %v46 = vld [vmem:[%s0] sm:$0xff]
    %v47 = vld [vmem:[#allocation2] sm:$0xff]
    %v48 = vld [vmem:[#allocation2 + $0x8] sm:$0xff]
    %v49 = vld [vmem:[#allocation2 + $0x10] sm:$0xff]
    %v50 = vld [vmem:[#allocation2 + $0x18] sm:$0xff]
    %v51 = vld [vmem:[#allocation2 + $0x20] sm:$0xff]
    %v52 = vld [vmem:[#allocation2 + $0x28] sm:$0xff]
    %v53 = vld [vmem:[#allocation2 + $0x30] sm:$0xff]
    %v54 = vld [vmem:[#allocation2 + $0x38] sm:$0xff]
    %v55 = vld [vmem:[#allocation2 + $0x40] sm:$0xff]
    %v56 = vld [vmem:[#allocation2 + $0x48] sm:$0xff]
    %v57 = vld [vmem:[#allocation2 + $0x50] sm:$0xff]
    %v58 = vld [vmem:[#allocation2 + $0x58] sm:$0xff]
    %v59 = vld [vmem:[#allocation2 + $0x60] sm:$0xff]
    %v60 = vld [vmem:[#allocation2 + $0x68] sm:$0xff]
    %v61 = vld [vmem:[#allocation2 + $0x70] sm:$0xff]
    %v62 = vld [vmem:[#allocation2 + $0x78] sm:$0xff]
    %v63 = vld [vmem:[#allocation2 + $0x80] sm:$0xff]
    %v64 = vld [vmem:[#allocation2 + $0x88] sm:$0xff]
    %v65 = vld [vmem:[#allocation2 + $0x90] sm:$0xff]
    %v66 = vld [vmem:[#allocation2 + $0x98] sm:$0xff]
    %v67 = vld [vmem:[#allocation2 + $0xa0] sm:$0xff]
    %v68 = vld [vmem:[#allocation2 + $0xa8] sm:$0xff]
    %v69 = vld [vmem:[#allocation2 + $0xb0] sm:$0xff]
    %v70 = vld [vmem:[#allocation2 + $0xb8] sm:$0xff]
    %v71 = vld [vmem:[#allocation2 + $0xc0] sm:$0xff]
    %v72 = vld [vmem:[#allocation2 + $0xc8] sm:$0xff]
    %v73 = vld [vmem:[#allocation2 + $0xd0] sm:$0xff]
    %v74 = vld [vmem:[#allocation2 + $0xd8] sm:$0xff]
    %v75 = vld [vmem:[#allocation2 + $0xe0] sm:$0xff]
    %v76 = vld [vmem:[#allocation2 + $0xe8] sm:$0xff]
    %v77 = vld [vmem:[#allocation2 + $0xf0] sm:$0xff]
    %v78 = vld [vmem:[#allocation2 + $0xf8] sm:$0xff]
    %80 = vst [vmem:[#allocation1] ss:$2 sm:$0xff] %v46
    %v81 = vld.sshfl [vmem:[#allocation1] sm:$0xff pattern:$0x75316420]
    %v82 = vld.sshfl [vmem:[#allocation1 + $0x8] sm:$0xff pattern:$0x75316420]
    %85 = vmatpush.msra.mxu0 %v62
    %86 = vmatpush.msra.mxu0 %v61
    %87 = vmatpush.msra.mxu0 %v60
    %88 = vmatpush.msra.mxu0 %v59
    %89 = vmatpush.msra.mxu0 %v58
    %90 = vmatpush.msra.mxu0 %v57
    %91 = vmatpush.msra.mxu0 %v56
    %92 = vmatpush.msra.mxu0 %v55
    %93 = vmatpush.msra.mxu0 %v54
    %94 = vmatpush.msra.mxu0 %v53
    %95 = vmatpush.msra.mxu0 %v52
    %96 = vmatpush.msra.mxu0 %v51
    %97 = vmatpush.msra.mxu0 %v50
    %98 = vmatpush.msra.mxu0 %v49
    %99 = vmatpush.msra.mxu0 %v48
    %100 = vmatpush.msra.mxu0 %v47
    %101 = vmatmul.f32.gmra.mxu0 %v81
    %v102 = vpop.f32.mrf.mxu0
    %v103 = vadd.f32 0.0, %v102
    %104 = vdwg.mxu0
    %105 = vmatpush.msra.mxu0 %v78
    %106 = vmatpush.msra.mxu0 %v77
    %107 = vmatpush.msra.mxu0 %v76
    %108 = vmatpush.msra.mxu0 %v75
    %109 = vmatpush.msra.mxu0 %v74
    %110 = vmatpush.msra.mxu0 %v73
    %111 = vmatpush.msra.mxu0 %v72
    %112 = vmatpush.msra.mxu0 %v71
    %113 = vmatpush.msra.mxu0 %v70
    %114 = vmatpush.msra.mxu0 %v69
    %115 = vmatpush.msra.mxu0 %v68
    %116 = vmatpush.msra.mxu0 %v67
    %117 = vmatpush.msra.mxu0 %v66
    %118 = vmatpush.msra.mxu0 %v65
    %119 = vmatpush.msra.mxu0 %v64
    %120 = vmatpush.msra.mxu0 %v63
    %121 = vmatmul.f32.gmra.mxu0 %v82
    %v122 = vpop.f32.mrf.mxu0
    %v123 = vadd.f32 %v103, %v122
    %124 = vdwg.mxu0
    %vm125 = vcmp.ge.f32.partialorder %v123, 0.0
    %v126 = vmul.f32 %v123, 0.1
    %v127 = vsel %vm125, %v123, %v126
    %v128 = vld [vmem:[#allocation4] sm:$0xff]
    %v129 = vld [vmem:[#allocation4 + $0x8] sm:$0xff]
    %v130 = vld [vmem:[#allocation4 + $0x10] sm:$0xff]
    %v131 = vld [vmem:[#allocation4 + $0x18] sm:$0xff]
    %v132 = vld [vmem:[#allocation4 + $0x20] sm:$0xff]
    %v133 = vld [vmem:[#allocation4 + $0x28] sm:$0xff]
    %v134 = vld [vmem:[#allocation4 + $0x30] sm:$0xff]
    %v135 = vld [vmem:[#allocation4 + $0x38] sm:$0xff]
    %v136 = vld [vmem:[#allocation4 + $0x40] sm:$0xff]
    %v137 = vld [vmem:[#allocation4 + $0x48] sm:$0xff]
    %v138 = vld [vmem:[#allocation4 + $0x50] sm:$0xff]
    %v139 = vld [vmem:[#allocation4 + $0x58] sm:$0xff]
    %v140 = vld [vmem:[#allocation4 + $0x60] sm:$0xff]
    %v141 = vld [vmem:[#allocation4 + $0x68] sm:$0xff]
    %v142 = vld [vmem:[#allocation4 + $0x70] sm:$0xff]
    %v143 = vld [vmem:[#allocation4 + $0x78] sm:$0xff]
    %144 = vmatpush.msra.mxu0 %v143
    %145 = vmatpush.msra.mxu0 %v142
    %146 = vmatpush.msra.mxu0 %v141
    %147 = vmatpush.msra.mxu0 %v140
    %148 = vmatpush.msra.mxu0 %v139
    %149 = vmatpush.msra.mxu0 %v138
    %150 = vmatpush.msra.mxu0 %v137
    %151 = vmatpush.msra.mxu0 %v136
    %152 = vmatpush.msra.mxu0 %v135
    %153 = vmatpush.msra.mxu0 %v134
    %154 = vmatpush.msra.mxu0 %v133
    %155 = vmatpush.msra.mxu0 %v132
    %156 = vmatpush.msra.mxu0 %v131
    %157 = vmatpush.msra.mxu0 %v130
    %158 = vmatpush.msra.mxu0 %v129
    %159 = vmatpush.msra.mxu0 %v128
    %160 = vmatmul.f32.gmra.mxu0 %v127
    %v161 = vpop.f32.mrf.mxu0
    %v162 = vadd.f32 0.0, %v161
    %163 = vdwg.mxu0
    %vm164 = vcmp.ge.f32.partialorder %v162, 0.0
    %v165 = vmul.f32 %v162, 0.1
    %v166 = vsel %vm164, %v162, %v165
    %167 = vst [vmem:[%s3] sm:$0xf] %v166
    // Predicated region
    $region22: #{phi_forward.1} parent=1 // pred_check
      _
    $region23: #{phi_forward.1} parent=1 // pred_check_branch
      %169 = sbr.rel (0) target = $region25
    $region24: #{phi_forward.1} parent=1 // pred_region
      _
    $region25: #{phi_forward.1} parent=1 // pred_fallthru
      _
    // Predicated region
    $region26: #{phi_forward.1} parent=1 // pred_check
      _
    $region27: #{phi_forward.1} parent=1 // pred_check_branch
      %171 = sbr.rel (0) target = $region29
    $region28: #{phi_forward.1} parent=1 // pred_region
      _
    $region29: #{phi_forward.1} parent=1 // pred_fallthru
      _
    %172 = vsyncpa [#allocation3], 1
    %173 = vsyncpa [#allocation5], 1

</llo_original>
